<compile_context>
chip_gen: v5e
topology: v5e:2x2
jax: 0.10.0
libtpu: 0.0.40
codegen_flags: <defaults>
</compile_context>

<pallas_src>
import jax
import jax.numpy as jnp
from jax import lax
from jax.experimental import pallas as pl
from jax.experimental.pallas import tpu as pltpu


# ----------------------------------------------------------------------------
# Fused RNN + FC Pallas kernel
# ----------------------------------------------------------------------------
def _rnn_fc_kernel(x_ref, wih_ref, whh_ref, b_ref, wfc_ref, bfc_ref, o_ref):
    """
    x_ref:   (T, TB, D)  time-major input tile
    wih_ref: (D, H)  = W_ih^T        whh_ref: (H, H) = W_hh^T
    b_ref:   (1, H)  = b_ih + b_hh
    wfc_ref: (H, OP) = W_fc^T zero-padded to OP (multiple of 128) lanes
    bfc_ref: (1, OP)
    o_ref:   (TB, OP) logits (lane-dense)
    """
    T, TB, _ = x_ref.shape
    H = whh_ref.shape[0]

    # Hoist weight/bias loads out of the time loop (VMEM-resident).
    wih = wih_ref[...]
    whh = whh_ref[...]
    b = b_ref[...]

    def step(t, h):
        x_t = x_ref[t]                                            # (TB, D)
        pre = (jnp.dot(x_t, wih, preferred_element_type=jnp.float32)
               + jnp.dot(h, whh, preferred_element_type=jnp.float32)
               + b)
        return jnp.tanh(pre)                                      # (TB, H)

    h0 = jnp.zeros((TB, H), jnp.float32)
    h_last = lax.fori_loop(0, T, step, h0, unroll=(T <= 16))

    o_ref[...] = (jnp.dot(h_last, wfc_ref[...],
                          preferred_element_type=jnp.float32)
                  + bfc_ref[...])


# ----------------------------------------------------------------------------
# Wrapper
# ----------------------------------------------------------------------------
def _pick_batch_tile(B):
    if B <= 8:
        return B
    for cand in (256, 128, 64, 32, 16, 8):
        if B % cand == 0:
            return cand
    return 8  # will pad batch up to a multiple of 8


def simple_rnn_forward(x, params):
    """Equivalent of SimpleRNN.forward: out, _ = rnn(x); fc(out[:, -1, :]).

    x: (B, T, input_dim) float32, batch_first (PyTorch convention).
    """
    B, T, D = x.shape
    w_ih, w_hh = params["w_ih"], params["w_hh"]                   # (H, D), (H, H)
    b = (params["b_ih"] + params["b_hh"]).reshape(1, -1)          # (1, H)
    w_fc, b_fc = params["fc_w"], params["fc_b"]                   # (O, H), (O,)
    H = w_hh.shape[0]
    O = w_fc.shape[0]
    OP = pl.cdiv(O, 128) * 128                                    # lane-dense width

    # One-time trace-level layout prep (no per-step runtime cost).
    wih_t = w_ih.T                                                # (D, H)
    whh_t = w_hh.T                                                # (H, H)
    wfc_t = jnp.zeros((H, OP), jnp.float32).at[:, :O].set(w_fc.T)
    bfc_p = jnp.zeros((1, OP), jnp.float32).at[:, :O].set(b_fc)

    TB = _pick_batch_tile(B)
    Bp = pl.cdiv(B, TB) * TB
    x_tbd = jnp.transpose(x, (1, 0, 2))                           # (T, B, D) time-major
    if Bp != B:
        x_tbd = jnp.pad(x_tbd, ((0, 0), (0, Bp - B), (0, 0)))

    out = pl.pallas_call(
        _rnn_fc_kernel,
        out_shape=jax.ShapeDtypeStruct((Bp, OP), jnp.float32),
        grid=(Bp // TB,),
        in_specs=[
            pl.BlockSpec((T, TB, D), lambda i: (0, i, 0)),        # input tile per batch block
            pl.BlockSpec((D, H), lambda i: (0, 0)),               # resident weights
            pl.BlockSpec((H, H), lambda i: (0, 0)),
            pl.BlockSpec((1, H), lambda i: (0, 0)),
            pl.BlockSpec((H, OP), lambda i: (0, 0)),
            pl.BlockSpec((1, OP), lambda i: (0, 0)),
        ],
        out_specs=pl.BlockSpec((TB, OP), lambda i: (i, 0)),
        compiler_params=pltpu.CompilerParams(
            dimension_semantics=("parallel",)),
    )(x_tbd, wih_t, whh_t, b, wfc_t, bfc_p)

    return out[:B, :O]


# ----------------------------------------------------------------------------
# Params + reference + self-test
# ----------------------------------------------------------------------------
def init_params(key, input_dim, hidden_dim, output_dim):
    ks = jax.random.split(key, 6)
    bound = 1.0 / jnp.sqrt(hidden_dim)   # PyTorch nn.RNN / nn.Linear(H, O) init scale
    return {
        "w_ih": jax.random.uniform(ks[0], (hidden_dim, input_dim),
                                   jnp.float32, -bound, bound),
        "w_hh": jax.random.uniform(ks[1], (hidden_dim, hidden_dim),
                                   jnp.float32, -bound, bound),
        "b_ih": jax.random.uniform(ks[2], (hidden_dim,), jnp.float32, -bound, bound),
        "b_hh": jax.random.uniform(ks[3], (hidden_dim,), jnp.float32, -bound, bound),
        "fc_w": jax.random.uniform(ks[4], (output_dim, hidden_dim),
                                   jnp.float32, -bound, bound),
        "fc_b": jax.random.uniform(ks[5], (output_dim,), jnp.float32, -bound, bound),
    }


def _reference(x, params):
    B, T, _ = x.shape
    H = params["w_hh"].shape[0]
    h = jnp.zeros((B, H), jnp.float32)
    for t in range(T):
        h = jnp.tanh(x[:, t, :] @ params["w_ih"].T + params["b_ih"]
                     + h @ params["w_hh"].T + params["b_hh"])
    return h @ params["fc_w"].T + params["fc_b"]


if __name__ == "__main__":
    key = jax.random.PRNGKey(0)
    kx, kp = jax.random.split(key)

    B, T, D, H, O = 2, 8, 16, 32, 10   # batch, seq, input_dim, hidden_dim, output_dim
    x = jax.random.normal(kx, (B, T, D), jnp.float32)
    params = init_params(kp, D, H, O)

    out = jax.jit(simple_rnn_forward)(x, params)
    out = jax.block_until_ready(out)

    assert out.shape == (B, O), out.shape
    assert out.dtype == jnp.float32

    ref = _reference(x, params)
    assert jnp.allclose(out, ref, atol=1e-4, rtol=1e-4), \
        float(jnp.max(jnp.abs(out - ref)))

    print("KERNEL_OK")
</pallas_src>

<mosaic_0001>
module attributes {stable_mosaic.version = 11 : i64} {
  func.func @_rnn_fc_kernel(%arg0: i32, %arg1: memref<8x2x16xf32, #tpu.memory_space<vmem>>, %arg2: memref<16x32xf32, #tpu.memory_space<vmem>>, %arg3: memref<32x32xf32, #tpu.memory_space<vmem>>, %arg4: memref<1x32xf32, #tpu.memory_space<vmem>>, %arg5: memref<32x128xf32, #tpu.memory_space<vmem>>, %arg6: memref<1x128xf32, #tpu.memory_space<vmem>>, %arg7: memref<2x128xf32, #tpu.memory_space<vmem>>) attributes {dimension_semantics = [#tpu.dimension_semantics<parallel>], iteration_bounds = array<i64: 1>, scalar_prefetch = 0 : i64, scratch_operands = 0 : i64, tpu.core_type = #tpu.core_type<tc>, window_params = [{transform_indices = @transform_0, window_bounds = array<i64: 8, 2, 16>}, {pipeline_mode = #tpu.pipeline_mode<synchronous>, transform_indices = @transform_1, window_bounds = array<i64: 16, 32>}, {pipeline_mode = #tpu.pipeline_mode<synchronous>, transform_indices = @transform_2, window_bounds = array<i64: 32, 32>}, {pipeline_mode = #tpu.pipeline_mode<synchronous>, transform_indices = @transform_3, window_bounds = array<i64: 1, 32>}, {pipeline_mode = #tpu.pipeline_mode<synchronous>, transform_indices = @transform_4, window_bounds = array<i64: 32, 128>}, {pipeline_mode = #tpu.pipeline_mode<synchronous>, transform_indices = @transform_5, window_bounds = array<i64: 1, 128>}, {transform_indices = @transform_6, window_bounds = array<i64: 2, 128>}]} {
    %c0 = arith.constant 0 : index
    %c0_0 = arith.constant 0 : index
    %0 = vector.load %arg2[%c0, %c0_0] : memref<16x32xf32, #tpu.memory_space<vmem>>, vector<16x32xf32>
    %c0_1 = arith.constant 0 : index
    %c0_2 = arith.constant 0 : index
    %1 = vector.load %arg3[%c0_1, %c0_2] : memref<32x32xf32, #tpu.memory_space<vmem>>, vector<32x32xf32>
    %c0_3 = arith.constant 0 : index
    %c0_4 = arith.constant 0 : index
    %2 = vector.load %arg4[%c0_3, %c0_4] : memref<1x32xf32, #tpu.memory_space<vmem>>, vector<1x32xf32>
    %cst = arith.constant 0.000000e+00 : f32
    %3 = vector.broadcast %cst : f32 to vector<2x32xf32>
    %c0_i32 = arith.constant 0 : i32
    %4 = arith.index_cast %c0_i32 : i32 to index
    %c0_5 = arith.constant 0 : index
    %c0_6 = arith.constant 0 : index
    %5 = vector.load %arg1[%4, %c0_5, %c0_6] : memref<8x2x16xf32, #tpu.memory_space<vmem>>, vector<1x2x16xf32>
    %6 = vector.shape_cast %5 : vector<1x2x16xf32> to vector<2x16xf32>
    %cst_7 = arith.constant dense<0.000000e+00> : vector<2x32xf32>
    %7 = tpu.matmul %6, %0, %cst_7 {dimension_numbers = #tpu.dot_dimension_numbers<[1], [0], [0], [1], [0, 0, 1, 1], [], []>} : vector<2x16xf32>, vector<16x32xf32>, vector<2x32xf32> -> vector<2x32xf32>
    %cst_8 = arith.constant dense<0.000000e+00> : vector<2x32xf32>
    %8 = tpu.matmul %3, %1, %cst_8 {dimension_numbers = #tpu.dot_dimension_numbers<[1], [0], [0], [1], [0, 0, 1, 1], [], []>} : vector<2x32xf32>, vector<32x32xf32>, vector<2x32xf32> -> vector<2x32xf32>
    %9 = arith.addf %7, %8 : vector<2x32xf32>
    %10 = vector.broadcast %2 : vector<1x32xf32> to vector<2x32xf32>
    %11 = arith.addf %9, %10 : vector<2x32xf32>
    %12 = math.tanh %11 : vector<2x32xf32>
    %c1_i32 = arith.constant 1 : i32
    %13 = arith.index_cast %c1_i32 : i32 to index
    %c0_9 = arith.constant 0 : index
    %c0_10 = arith.constant 0 : index
    %14 = vector.load %arg1[%13, %c0_9, %c0_10] : memref<8x2x16xf32, #tpu.memory_space<vmem>>, vector<1x2x16xf32>
    %15 = vector.shape_cast %14 : vector<1x2x16xf32> to vector<2x16xf32>
    %cst_11 = arith.constant dense<0.000000e+00> : vector<2x32xf32>
    %16 = tpu.matmul %15, %0, %cst_11 {dimension_numbers = #tpu.dot_dimension_numbers<[1], [0], [0], [1], [0, 0, 1, 1], [], []>} : vector<2x16xf32>, vector<16x32xf32>, vector<2x32xf32> -> vector<2x32xf32>
    %cst_12 = arith.constant dense<0.000000e+00> : vector<2x32xf32>
    %17 = tpu.matmul %12, %1, %cst_12 {dimension_numbers = #tpu.dot_dimension_numbers<[1], [0], [0], [1], [0, 0, 1, 1], [], []>} : vector<2x32xf32>, vector<32x32xf32>, vector<2x32xf32> -> vector<2x32xf32>
    %18 = arith.addf %16, %17 : vector<2x32xf32>
    %19 = vector.broadcast %2 : vector<1x32xf32> to vector<2x32xf32>
    %20 = arith.addf %18, %19 : vector<2x32xf32>
    %21 = math.tanh %20 : vector<2x32xf32>
    %c2_i32 = arith.constant 2 : i32
    %22 = arith.index_cast %c2_i32 : i32 to index
    %c0_13 = arith.constant 0 : index
    %c0_14 = arith.constant 0 : index
    %23 = vector.load %arg1[%22, %c0_13, %c0_14] : memref<8x2x16xf32, #tpu.memory_space<vmem>>, vector<1x2x16xf32>
    %24 = vector.shape_cast %23 : vector<1x2x16xf32> to vector<2x16xf32>
    %cst_15 = arith.constant dense<0.000000e+00> : vector<2x32xf32>
    %25 = tpu.matmul %24, %0, %cst_15 {dimension_numbers = #tpu.dot_dimension_numbers<[1], [0], [0], [1], [0, 0, 1, 1], [], []>} : vector<2x16xf32>, vector<16x32xf32>, vector<2x32xf32> -> vector<2x32xf32>
    %cst_16 = arith.constant dense<0.000000e+00> : vector<2x32xf32>
    %26 = tpu.matmul %21, %1, %cst_16 {dimension_numbers = #tpu.dot_dimension_numbers<[1], [0], [0], [1], [0, 0, 1, 1], [], []>} : vector<2x32xf32>, vector<32x32xf32>, vector<2x32xf32> -> vector<2x32xf32>
    %27 = arith.addf %25, %26 : vector<2x32xf32>
    %28 = vector.broadcast %2 : vector<1x32xf32> to vector<2x32xf32>
    %29 = arith.addf %27, %28 : vector<2x32xf32>
    %30 = math.tanh %29 : vector<2x32xf32>
    %c3_i32 = arith.constant 3 : i32
    %31 = arith.index_cast %c3_i32 : i32 to index
    %c0_17 = arith.constant 0 : index
    %c0_18 = arith.constant 0 : index
    %32 = vector.load %arg1[%31, %c0_17, %c0_18] : memref<8x2x16xf32, #tpu.memory_space<vmem>>, vector<1x2x16xf32>
    %33 = vector.shape_cast %32 : vector<1x2x16xf32> to vector<2x16xf32>
    %cst_19 = arith.constant dense<0.000000e+00> : vector<2x32xf32>
    %34 = tpu.matmul %33, %0, %cst_19 {dimension_numbers = #tpu.dot_dimension_numbers<[1], [0], [0], [1], [0, 0, 1, 1], [], []>} : vector<2x16xf32>, vector<16x32xf32>, vector<2x32xf32> -> vector<2x32xf32>
    %cst_20 = arith.constant dense<0.000000e+00> : vector<2x32xf32>
    %35 = tpu.matmul %30, %1, %cst_20 {dimension_numbers = #tpu.dot_dimension_numbers<[1], [0], [0], [1], [0, 0, 1, 1], [], []>} : vector<2x32xf32>, vector<32x32xf32>, vector<2x32xf32> -> vector<2x32xf32>
    %36 = arith.addf %34, %35 : vector<2x32xf32>
    %37 = vector.broadcast %2 : vector<1x32xf32> to vector<2x32xf32>
    %38 = arith.addf %36, %37 : vector<2x32xf32>
    %39 = math.tanh %38 : vector<2x32xf32>
    %c4_i32 = arith.constant 4 : i32
    %40 = arith.index_cast %c4_i32 : i32 to index
    %c0_21 = arith.constant 0 : index
    %c0_22 = arith.constant 0 : index
    %41 = vector.load %arg1[%40, %c0_21, %c0_22] : memref<8x2x16xf32, #tpu.memory_space<vmem>>, vector<1x2x16xf32>
    %42 = vector.shape_cast %41 : vector<1x2x16xf32> to vector<2x16xf32>
    %cst_23 = arith.constant dense<0.000000e+00> : vector<2x32xf32>
    %43 = tpu.matmul %42, %0, %cst_23 {dimension_numbers = #tpu.dot_dimension_numbers<[1], [0], [0], [1], [0, 0, 1, 1], [], []>} : vector<2x16xf32>, vector<16x32xf32>, vector<2x32xf32> -> vector<2x32xf32>
    %cst_24 = arith.constant dense<0.000000e+00> : vector<2x32xf32>
    %44 = tpu.matmul %39, %1, %cst_24 {dimension_numbers = #tpu.dot_dimension_numbers<[1], [0], [0], [1], [0, 0, 1, 1], [], []>} : vector<2x32xf32>, vector<32x32xf32>, vector<2x32xf32> -> vector<2x32xf32>
    %45 = arith.addf %43, %44 : vector<2x32xf32>
    %46 = vector.broadcast %2 : vector<1x32xf32> to vector<2x32xf32>
    %47 = arith.addf %45, %46 : vector<2x32xf32>
    %48 = math.tanh %47 : vector<2x32xf32>
    %c5_i32 = arith.constant 5 : i32
    %49 = arith.index_cast %c5_i32 : i32 to index
    %c0_25 = arith.constant 0 : index
    %c0_26 = arith.constant 0 : index
    %50 = vector.load %arg1[%49, %c0_25, %c0_26] : memref<8x2x16xf32, #tpu.memory_space<vmem>>, vector<1x2x16xf32>
    %51 = vector.shape_cast %50 : vector<1x2x16xf32> to vector<2x16xf32>
    %cst_27 = arith.constant dense<0.000000e+00> : vector<2x32xf32>
    %52 = tpu.matmul %51, %0, %cst_27 {dimension_numbers = #tpu.dot_dimension_numbers<[1], [0], [0], [1], [0, 0, 1, 1], [], []>} : vector<2x16xf32>, vector<16x32xf32>, vector<2x32xf32> -> vector<2x32xf32>
    %cst_28 = arith.constant dense<0.000000e+00> : vector<2x32xf32>
    %53 = tpu.matmul %48, %1, %cst_28 {dimension_numbers = #tpu.dot_dimension_numbers<[1], [0], [0], [1], [0, 0, 1, 1], [], []>} : vector<2x32xf32>, vector<32x32xf32>, vector<2x32xf32> -> vector<2x32xf32>
    %54 = arith.addf %52, %53 : vector<2x32xf32>
    %55 = vector.broadcast %2 : vector<1x32xf32> to vector<2x32xf32>
    %56 = arith.addf %54, %55 : vector<2x32xf32>
    %57 = math.tanh %56 : vector<2x32xf32>
    %c6_i32 = arith.constant 6 : i32
    %58 = arith.index_cast %c6_i32 : i32 to index
    %c0_29 = arith.constant 0 : index
    %c0_30 = arith.constant 0 : index
    %59 = vector.load %arg1[%58, %c0_29, %c0_30] : memref<8x2x16xf32, #tpu.memory_space<vmem>>, vector<1x2x16xf32>
    %60 = vector.shape_cast %59 : vector<1x2x16xf32> to vector<2x16xf32>
    %cst_31 = arith.constant dense<0.000000e+00> : vector<2x32xf32>
    %61 = tpu.matmul %60, %0, %cst_31 {dimension_numbers = #tpu.dot_dimension_numbers<[1], [0], [0], [1], [0, 0, 1, 1], [], []>} : vector<2x16xf32>, vector<16x32xf32>, vector<2x32xf32> -> vector<2x32xf32>
    %cst_32 = arith.constant dense<0.000000e+00> : vector<2x32xf32>
    %62 = tpu.matmul %57, %1, %cst_32 {dimension_numbers = #tpu.dot_dimension_numbers<[1], [0], [0], [1], [0, 0, 1, 1], [], []>} : vector<2x32xf32>, vector<32x32xf32>, vector<2x32xf32> -> vector<2x32xf32>
    %63 = arith.addf %61, %62 : vector<2x32xf32>
    %64 = vector.broadcast %2 : vector<1x32xf32> to vector<2x32xf32>
    %65 = arith.addf %63, %64 : vector<2x32xf32>
    %66 = math.tanh %65 : vector<2x32xf32>
    %c7_i32 = arith.constant 7 : i32
    %67 = arith.index_cast %c7_i32 : i32 to index
    %c0_33 = arith.constant 0 : index
    %c0_34 = arith.constant 0 : index
    %68 = vector.load %arg1[%67, %c0_33, %c0_34] : memref<8x2x16xf32, #tpu.memory_space<vmem>>, vector<1x2x16xf32>
    %69 = vector.shape_cast %68 : vector<1x2x16xf32> to vector<2x16xf32>
    %cst_35 = arith.constant dense<0.000000e+00> : vector<2x32xf32>
    %70 = tpu.matmul %69, %0, %cst_35 {dimension_numbers = #tpu.dot_dimension_numbers<[1], [0], [0], [1], [0, 0, 1, 1], [], []>} : vector<2x16xf32>, vector<16x32xf32>, vector<2x32xf32> -> vector<2x32xf32>
    %cst_36 = arith.constant dense<0.000000e+00> : vector<2x32xf32>
    %71 = tpu.matmul %66, %1, %cst_36 {dimension_numbers = #tpu.dot_dimension_numbers<[1], [0], [0], [1], [0, 0, 1, 1], [], []>} : vector<2x32xf32>, vector<32x32xf32>, vector<2x32xf32> -> vector<2x32xf32>
    %72 = arith.addf %70, %71 : vector<2x32xf32>
    %73 = vector.broadcast %2 : vector<1x32xf32> to vector<2x32xf32>
    %74 = arith.addf %72, %73 : vector<2x32xf32>
    %75 = math.tanh %74 : vector<2x32xf32>
    %c8_i32 = arith.constant 8 : i32
    %c0_37 = arith.constant 0 : index
    %c0_38 = arith.constant 0 : index
    %76 = vector.load %arg5[%c0_37, %c0_38] : memref<32x128xf32, #tpu.memory_space<vmem>>, vector<32x128xf32>
    %cst_39 = arith.constant dense<0.000000e+00> : vector<2x128xf32>
    %77 = tpu.matmul %75, %76, %cst_39 {dimension_numbers = #tpu.dot_dimension_numbers<[1], [0], [0], [1], [0, 0, 1, 1], [], []>} : vector<2x32xf32>, vector<32x128xf32>, vector<2x128xf32> -> vector<2x128xf32>
    %c0_40 = arith.constant 0 : index
    %c0_41 = arith.constant 0 : index
    %78 = vector.load %arg6[%c0_40, %c0_41] : memref<1x128xf32, #tpu.memory_space<vmem>>, vector<1x128xf32>
    %79 = vector.broadcast %78 : vector<1x128xf32> to vector<2x128xf32>
    %80 = arith.addf %77, %79 : vector<2x128xf32>
    %c0_42 = arith.constant 0 : index
    %c0_43 = arith.constant 0 : index
    %81 = vector.load %arg7[%c0_42, %c0_43] : memref<2x128xf32, #tpu.memory_space<vmem>>, vector<2x128xf32>
    tpu.vector_store %arg7[%c0_42, %c0_43], %80 {strides = array<i32>} : memref<2x128xf32, #tpu.memory_space<vmem>>, vector<2x128xf32>,
    return
  }
  func.func @transform_0(%arg0: i32) -> (i32, i32, i32) {
    %c0_i32 = arith.constant 0 : i32
    %c0_i32_0 = arith.constant 0 : i32
    %c0_i32_1 = arith.constant 0 : i32
    return %c0_i32, %arg0, %c0_i32_0 : i32, i32, i32
  }
  func.func @transform_1(%arg0: i32) -> (i32, i32) {
    %c0_i32 = arith.constant 0 : i32
    %c0_i32_0 = arith.constant 0 : i32
    %c0_i32_1 = arith.constant 0 : i32
    return %c0_i32, %c0_i32_0 : i32, i32
  }
  func.func @transform_2(%arg0: i32) -> (i32, i32) {
    %c0_i32 = arith.constant 0 : i32
    %c0_i32_0 = arith.constant 0 : i32
    %c0_i32_1 = arith.constant 0 : i32
    return %c0_i32, %c0_i32_0 : i32, i32
  }
  func.func @transform_3(%arg0: i32) -> (i32, i32) {
    %c0_i32 = arith.constant 0 : i32
    %c0_i32_0 = arith.constant 0 : i32
    %c0_i32_1 = arith.constant 0 : i32
    return %c0_i32, %c0_i32_0 : i32, i32
  }
  func.func @transform_4(%arg0: i32) -> (i32, i32) {
    %c0_i32 = arith.constant 0 : i32
    %c0_i32_0 = arith.constant 0 : i32
    %c0_i32_1 = arith.constant 0 : i32
    return %c0_i32, %c0_i32_0 : i32, i32
  }
  func.func @transform_5(%arg0: i32) -> (i32, i32) {
    %c0_i32 = arith.constant 0 : i32
    %c0_i32_0 = arith.constant 0 : i32
    %c0_i32_1 = arith.constant 0 : i32
    return %c0_i32, %c0_i32_0 : i32, i32
  }
  func.func @transform_6(%arg0: i32) -> (i32, i32) {
    %c0_i32 = arith.constant 0 : i32
    %c0_i32_0 = arith.constant 0 : i32
    return %arg0, %c0_i32 : i32, i32
  }
}

</mosaic_0001>

<llo_original>
// kernel: simple_rnn_forward.1
$region0: #{simple_rnn_forward.1}
  #allocation0 [shape = 'u32[]', space=smem, size = 0x4, offset = 0x4, fixed_abs, tag = 'smem constant byte address 0x4 - core index']
  #allocation1 [shape = 'u32[72,128]{1,0:T(1,128)}', space=vmem, size = 0x9000, scoped, tag = 'internal scratch']
  %s0 = inlined_call_operand.vmem [shape: f32[8,2,16], index: 0, kind: input, shape index: {}]
  %s1 = inlined_call_operand.vmem [shape: f32[16,32], index: 1, kind: input, shape index: {}]
  %s2 = inlined_call_operand.vmem [shape: f32[32,32], index: 2, kind: input, shape index: {}]
  %s3 = inlined_call_operand.vmem [shape: f32[1,32], index: 3, kind: input, shape index: {}]
  %s4 = inlined_call_operand.vmem [shape: f32[32,128], index: 4, kind: input, shape index: {}]
  %s5 = inlined_call_operand.vmem [shape: f32[1,128], index: 5, kind: input, shape index: {}]
  %s6 = inlined_call_operand.hbm [shape: f32[2,128], index: 6, kind: output, shape index: {}]
  %s7 = sld [smem:[#allocation0]]
  $region34: #{simple_rnn_forward.1} parent=0
    _
  %s9 = ssub.s32 1, %s7
  %s10 = scalar_select 0, %s9, %s7
  $region1: #{simple_rnn_forward.1} parent=0
    #allocation2 [shape = 'u8[1024]{0}', space=vmem, size = 0x400, scoped, tag = 'output window, operand 0, single buffered']
    #allocation3 [shape = 's32[1]{0}', space=sflag, size = 0x4, scoped, tag = 'scoped memory for simple_rnn_forward.1']
    %11 = vsyncpa [#allocation3], 0
    // Predicated region
    $region2: #{simple_rnn_forward.1} parent=1 // pred_check
      _
    $region3: #{simple_rnn_forward.1} parent=1 // pred_check_branch
      %13 = sbr.rel (0) target = $region5
    $region4: #{simple_rnn_forward.1} parent=1 // pred_region
      _
    $region5: #{simple_rnn_forward.1} parent=1 // pred_fallthru
      _
    // Predicated region
    $region6: #{simple_rnn_forward.1} parent=1 // pred_check
      _
    $region7: #{simple_rnn_forward.1} parent=1 // pred_check_branch
      %15 = sbr.rel (0) target = $region9
    $region8: #{simple_rnn_forward.1} parent=1 // pred_region
      _
    $region9: #{simple_rnn_forward.1} parent=1 // pred_fallthru
      _
    // Predicated region
    $region10: #{simple_rnn_forward.1} parent=1 // pred_check
      _
    $region11: #{simple_rnn_forward.1} parent=1 // pred_check_branch
      %17 = sbr.rel (0) target = $region13
    $region12: #{simple_rnn_forward.1} parent=1 // pred_region
      _
    $region13: #{simple_rnn_forward.1} parent=1 // pred_fallthru
      _
    // Predicated region
    $region14: #{simple_rnn_forward.1} parent=1 // pred_check
      _
    $region15: #{simple_rnn_forward.1} parent=1 // pred_check_branch
      %19 = sbr.rel (0) target = $region17
    $region16: #{simple_rnn_forward.1} parent=1 // pred_region
      _
    $region17: #{simple_rnn_forward.1} parent=1 // pred_fallthru
      _
    // Predicated region
    $region18: #{simple_rnn_forward.1} parent=1 // pred_check
      _
    $region19: #{simple_rnn_forward.1} parent=1 // pred_check_branch
      %21 = sbr.rel (0) target = $region21
    $region20: #{simple_rnn_forward.1} parent=1 // pred_region
      _
    $region21: #{simple_rnn_forward.1} parent=1 // pred_fallthru
      _
    // Predicated region
    $region22: #{simple_rnn_forward.1} parent=1 // pred_check
      _
    $region23: #{simple_rnn_forward.1} parent=1 // pred_check_branch
      %23 = sbr.rel (0) target = $region25
    $region24: #{simple_rnn_forward.1} parent=1 // pred_region
      _
    $region25: #{simple_rnn_forward.1} parent=1 // pred_fallthru
      _
    %v24 = vld [vmem:[%s1] sm:$0xff]
    %v25 = vld [vmem:[%s1 + $0x8] sm:$0xff]
    %v26 = vld [vmem:[%s2] sm:$0xff]
    %v27 = vld [vmem:[%s2 + $0x8] sm:$0xff]
    %v28 = vld [vmem:[%s2 + $0x10] sm:$0xff]
    %v29 = vld [vmem:[%s2 + $0x18] sm:$0xff]
    %v30 = vld [vmem:[%s3] sm:$0x1]
    %v31 = vld [vmem:[%s0] sm:$0x3]
    %vm32 = vcmask 261120
    %v34 = vsel %vm32, 0.0, 0
    %36 = vmatpush.msra.mxu0 0.0
    %37 = vmatpush.msra.mxu0 0.0
    %38 = vmatpush.msra.mxu0 0.0
    %39 = vmatpush.msra.mxu0 0.0
    %40 = vmatpush.msra.mxu0 0.0
    %41 = vmatpush.msra.mxu0 0.0
    %42 = vmatpush.msra.mxu0 0.0
    %43 = vmatpush.msra.mxu0 0.0
    %44 = vmatpush.msra.mxu0 0.0
    %45 = vmatpush.msra.mxu0 0.0
    %46 = vmatpush.msra.mxu0 0.0
    %47 = vmatpush.msra.mxu0 0.0
    %48 = vmatpush.msra.mxu0 %v29
    %49 = vmatpush.msra.mxu0 %v28
    %50 = vmatpush.msra.mxu0 %v27
    %51 = vmatpush.msra.mxu0 %v26
    %52 = vmatmul.f32.gmra.mxu0 %v34
    %v53 = vpop.f32.mrf.mxu0
    %v54 = vadd.f32 0.0, %v53
    %55 = vdwg.mxu0
    %vm56 = vcmask 130048
    %v58 = vsel %vm56, %v31, 0
    %60 = vmatpush.msra.mxu0 0.0
    %61 = vmatpush.msra.mxu0 0.0
    %62 = vmatpush.msra.mxu0 0.0
    %63 = vmatpush.msra.mxu0 0.0
    %64 = vmatpush.msra.mxu0 0.0
    %65 = vmatpush.msra.mxu0 0.0
    %66 = vmatpush.msra.mxu0 0.0
    %67 = vmatpush.msra.mxu0 0.0
    %68 = vmatpush.msra.mxu0 0.0
    %69 = vmatpush.msra.mxu0 0.0
    %70 = vmatpush.msra.mxu0 0.0
    %71 = vmatpush.msra.mxu0 0.0
    %72 = vmatpush.msra.mxu0 0.0
    %73 = vmatpush.msra.mxu0 0.0
    %74 = vmatpush.msra.mxu0 %v25
    %75 = vmatpush.msra.mxu0 %v24
    %76 = vmatmul.f32.gmra.mxu0 %v58
    %v77 = vpop.f32.mrf.mxu0
    %v78 = vadd.f32 %v54, %v77
    %79 = vdwg.mxu0
    %v81 = vperm.slane %v30, 0
    %v83 = vadd.f32 %v78, %v81
    %v84 = vtanh.pop %v83
    %s85 = scalar_lea.vmem %s0, 2
    %v86 = vld [vmem:[%s85] sm:$0x3]
    %v88 = vsel %vm32, %v84, 0
    %90 = vmatpush.msra.mxu0 0.0
    %91 = vmatpush.msra.mxu0 0.0
    %92 = vmatpush.msra.mxu0 0.0
    %93 = vmatpush.msra.mxu0 0.0
    %94 = vmatpush.msra.mxu0 0.0
    %95 = vmatpush.msra.mxu0 0.0
    %96 = vmatpush.msra.mxu0 0.0
    %97 = vmatpush.msra.mxu0 0.0
    %98 = vmatpush.msra.mxu0 0.0
    %99 = vmatpush.msra.mxu0 0.0
    %100 = vmatpush.msra.mxu0 0.0
    %101 = vmatpush.msra.mxu0 0.0
    %102 = vmatpush.msra.mxu0 %v29
    %103 = vmatpush.msra.mxu0 %v28
    %104 = vmatpush.msra.mxu0 %v27
    %105 = vmatpush.msra.mxu0 %v26
    %106 = vmatmul.f32.gmra.mxu0 %v88
    %v107 = vpop.f32.mrf.mxu0
    %v108 = vadd.f32 0.0, %v107
    %109 = vdwg.mxu0
    %v111 = vsel %vm56, %v86, 0
    %113 = vmatpush.msra.mxu0 0.0
    %114 = vmatpush.msra.mxu0 0.0
    %115 = vmatpush.msra.mxu0 0.0
    %116 = vmatpush.msra.mxu0 0.0
    %117 = vmatpush.msra.mxu0 0.0
    %118 = vmatpush.msra.mxu0 0.0
    %119 = vmatpush.msra.mxu0 0.0
    %120 = vmatpush.msra.mxu0 0.0
    %121 = vmatpush.msra.mxu0 0.0
    %122 = vmatpush.msra.mxu0 0.0
    %123 = vmatpush.msra.mxu0 0.0
    %124 = vmatpush.msra.mxu0 0.0
    %125 = vmatpush.msra.mxu0 0.0
    %126 = vmatpush.msra.mxu0 0.0
    %127 = vmatpush.msra.mxu0 %v25
    %128 = vmatpush.msra.mxu0 %v24
    %129 = vmatmul.f32.gmra.mxu0 %v111
    %v130 = vpop.f32.mrf.mxu0
    %v131 = vadd.f32 %v108, %v130
    %132 = vdwg.mxu0
    %v133 = vadd.f32 %v131, %v81
    %v134 = vtanh.pop %v133
    %s135 = scalar_lea.vmem %s0, 4
    %v136 = vld [vmem:[%s135] sm:$0x3]
    %v138 = vsel %vm32, %v134, 0
    %140 = vmatpush.msra.mxu0 0.0
    %141 = vmatpush.msra.mxu0 0.0
    %142 = vmatpush.msra.mxu0 0.0
    %143 = vmatpush.msra.mxu0 0.0
    %144 = vmatpush.msra.mxu0 0.0
    %145 = vmatpush.msra.mxu0 0.0
    %146 = vmatpush.msra.mxu0 0.0
    %147 = vmatpush.msra.mxu0 0.0
    %148 = vmatpush.msra.mxu0 0.0
    %149 = vmatpush.msra.mxu0 0.0
    %150 = vmatpush.msra.mxu0 0.0
    %151 = vmatpush.msra.mxu0 0.0
    %152 = vmatpush.msra.mxu0 %v29
    %153 = vmatpush.msra.mxu0 %v28
    %154 = vmatpush.msra.mxu0 %v27
    %155 = vmatpush.msra.mxu0 %v26
    %156 = vmatmul.f32.gmra.mxu0 %v138
    %v157 = vpop.f32.mrf.mxu0
    %v158 = vadd.f32 0.0, %v157
    %159 = vdwg.mxu0
    %v161 = vsel %vm56, %v136, 0
    %163 = vmatpush.msra.mxu0 0.0
    %164 = vmatpush.msra.mxu0 0.0
    %165 = vmatpush.msra.mxu0 0.0
    %166 = vmatpush.msra.mxu0 0.0
    %167 = vmatpush.msra.mxu0 0.0
    %168 = vmatpush.msra.mxu0 0.0
    %169 = vmatpush.msra.mxu0 0.0
    %170 = vmatpush.msra.mxu0 0.0
    %171 = vmatpush.msra.mxu0 0.0
    %172 = vmatpush.msra.mxu0 0.0
    %173 = vmatpush.msra.mxu0 0.0
    %174 = vmatpush.msra.mxu0 0.0
    %175 = vmatpush.msra.mxu0 0.0
    %176 = vmatpush.msra.mxu0 0.0
    %177 = vmatpush.msra.mxu0 %v25
    %178 = vmatpush.msra.mxu0 %v24
    %179 = vmatmul.f32.gmra.mxu0 %v161
    %v180 = vpop.f32.mrf.mxu0
    %v181 = vadd.f32 %v158, %v180
    %182 = vdwg.mxu0
    %v183 = vadd.f32 %v181, %v81
    %v184 = vtanh.pop %v183
    %s185 = scalar_lea.vmem %s0, 6
    %v186 = vld [vmem:[%s185] sm:$0x3]
    %v188 = vsel %vm32, %v184, 0
    %190 = vmatpush.msra.mxu0 0.0
    %191 = vmatpush.msra.mxu0 0.0
    %192 = vmatpush.msra.mxu0 0.0
    %193 = vmatpush.msra.mxu0 0.0
    %194 = vmatpush.msra.mxu0 0.0
    %195 = vmatpush.msra.mxu0 0.0
    %196 = vmatpush.msra.mxu0 0.0
    %197 = vmatpush.msra.mxu0 0.0
    %198 = vmatpush.msra.mxu0 0.0
    %199 = vmatpush.msra.mxu0 0.0
    %200 = vmatpush.msra.mxu0 0.0
    %201 = vmatpush.msra.mxu0 0.0
    %202 = vmatpush.msra.mxu0 %v29
    %203 = vmatpush.msra.mxu0 %v28
    %204 = vmatpush.msra.mxu0 %v27
    %205 = vmatpush.msra.mxu0 %v26
    %206 = vmatmul.f32.gmra.mxu0 %v188
    %v207 = vpop.f32.mrf.mxu0
    %v208 = vadd.f32 0.0, %v207
    %209 = vdwg.mxu0
    %v211 = vsel %vm56, %v186, 0
    %213 = vmatpush.msra.mxu0 0.0
    %214 = vmatpush.msra.mxu0 0.0
    %215 = vmatpush.msra.mxu0 0.0
    %216 = vmatpush.msra.mxu0 0.0
    %217 = vmatpush.msra.mxu0 0.0
    %218 = vmatpush.msra.mxu0 0.0
    %219 = vmatpush.msra.mxu0 0.0
    %220 = vmatpush.msra.mxu0 0.0
    %221 = vmatpush.msra.mxu0 0.0
    %222 = vmatpush.msra.mxu0 0.0
    %223 = vmatpush.msra.mxu0 0.0
    %224 = vmatpush.msra.mxu0 0.0
    %225 = vmatpush.msra.mxu0 0.0
    %226 = vmatpush.msra.mxu0 0.0
    %227 = vmatpush.msra.mxu0 %v25
    %228 = vmatpush.msra.mxu0 %v24
    %229 = vmatmul.f32.gmra.mxu0 %v211
    %v230 = vpop.f32.mrf.mxu0
    %v231 = vadd.f32 %v208, %v230
    %232 = vdwg.mxu0
    %v233 = vadd.f32 %v231, %v81
    %v234 = vtanh.pop %v233
    %s235 = scalar_lea.vmem %s0, 8
    %v236 = vld [vmem:[%s235] sm:$0x3]
    %v238 = vsel %vm32, %v234, 0
    %240 = vmatpush.msra.mxu0 0.0
    %241 = vmatpush.msra.mxu0 0.0
    %242 = vmatpush.msra.mxu0 0.0
    %243 = vmatpush.msra.mxu0 0.0
    %244 = vmatpush.msra.mxu0 0.0
    %245 = vmatpush.msra.mxu0 0.0
    %246 = vmatpush.msra.mxu0 0.0
    %247 = vmatpush.msra.mxu0 0.0
    %248 = vmatpush.msra.mxu0 0.0
    %249 = vmatpush.msra.mxu0 0.0
    %250 = vmatpush.msra.mxu0 0.0
    %251 = vmatpush.msra.mxu0 0.0
    %252 = vmatpush.msra.mxu0 %v29
    %253 = vmatpush.msra.mxu0 %v28
    %254 = vmatpush.msra.mxu0 %v27
    %255 = vmatpush.msra.mxu0 %v26
    %256 = vmatmul.f32.gmra.mxu0 %v238
    %v257 = vpop.f32.mrf.mxu0
    %v258 = vadd.f32 0.0, %v257
    %259 = vdwg.mxu0
    %v261 = vsel %vm56, %v236, 0
    %263 = vmatpush.msra.mxu0 0.0
    %264 = vmatpush.msra.mxu0 0.0
    %265 = vmatpush.msra.mxu0 0.0
    %266 = vmatpush.msra.mxu0 0.0
    %267 = vmatpush.msra.mxu0 0.0
    %268 = vmatpush.msra.mxu0 0.0
    %269 = vmatpush.msra.mxu0 0.0
    %270 = vmatpush.msra.mxu0 0.0
    %271 = vmatpush.msra.mxu0 0.0
    %272 = vmatpush.msra.mxu0 0.0
    %273 = vmatpush.msra.mxu0 0.0
    %274 = vmatpush.msra.mxu0 0.0
    %275 = vmatpush.msra.mxu0 0.0
    %276 = vmatpush.msra.mxu0 0.0
    %277 = vmatpush.msra.mxu0 %v25
    %278 = vmatpush.msra.mxu0 %v24
    %279 = vmatmul.f32.gmra.mxu0 %v261
    %v280 = vpop.f32.mrf.mxu0
    %v281 = vadd.f32 %v258, %v280
    %282 = vdwg.mxu0
    %v283 = vadd.f32 %v281, %v81
    %v284 = vtanh.pop %v283
    %s285 = scalar_lea.vmem %s0, 10
    %v286 = vld [vmem:[%s285] sm:$0x3]
    %v288 = vsel %vm32, %v284, 0
    %290 = vmatpush.msra.mxu0 0.0
    %291 = vmatpush.msra.mxu0 0.0
    %292 = vmatpush.msra.mxu0 0.0
    %293 = vmatpush.msra.mxu0 0.0
    %294 = vmatpush.msra.mxu0 0.0
    %295 = vmatpush.msra.mxu0 0.0
    %296 = vmatpush.msra.mxu0 0.0
    %297 = vmatpush.msra.mxu0 0.0
    %298 = vmatpush.msra.mxu0 0.0
    %299 = vmatpush.msra.mxu0 0.0
    %300 = vmatpush.msra.mxu0 0.0
    %301 = vmatpush.msra.mxu0 0.0
    %302 = vmatpush.msra.mxu0 %v29
    %303 = vmatpush.msra.mxu0 %v28
    %304 = vmatpush.msra.mxu0 %v27
    %305 = vmatpush.msra.mxu0 %v26
    %306 = vmatmul.f32.gmra.mxu0 %v288
    %v307 = vpop.f32.mrf.mxu0
    %v308 = vadd.f32 0.0, %v307
    %309 = vdwg.mxu0
    %v311 = vsel %vm56, %v286, 0
    %313 = vmatpush.msra.mxu0 0.0
    %314 = vmatpush.msra.mxu0 0.0
    %315 = vmatpush.msra.mxu0 0.0
    %316 = vmatpush.msra.mxu0 0.0
    %317 = vmatpush.msra.mxu0 0.0
    %318 = vmatpush.msra.mxu0 0.0
    %319 = vmatpush.msra.mxu0 0.0
    %320 = vmatpush.msra.mxu0 0.0
    %321 = vmatpush.msra.mxu0 0.0
    %322 = vmatpush.msra.mxu0 0.0
    %323 = vmatpush.msra.mxu0 0.0
    %324 = vmatpush.msra.mxu0 0.0
    %325 = vmatpush.msra.mxu0 0.0
    %326 = vmatpush.msra.mxu0 0.0
    %327 = vmatpush.msra.mxu0 %v25
    %328 = vmatpush.msra.mxu0 %v24
    %329 = vmatmul.f32.gmra.mxu0 %v311
    %v330 = vpop.f32.mrf.mxu0
    %v331 = vadd.f32 %v308, %v330
    %332 = vdwg.mxu0
    %v333 = vadd.f32 %v331, %v81
    %v334 = vtanh.pop %v333
    %s335 = scalar_lea.vmem %s0, 12
    %v336 = vld [vmem:[%s335] sm:$0x3]
    %v338 = vsel %vm32, %v334, 0
    %340 = vmatpush.msra.mxu0 0.0
    %341 = vmatpush.msra.mxu0 0.0
    %342 = vmatpush.msra.mxu0 0.0
    %343 = vmatpush.msra.mxu0 0.0
    %344 = vmatpush.msra.mxu0 0.0
    %345 = vmatpush.msra.mxu0 0.0
    %346 = vmatpush.msra.mxu0 0.0
    %347 = vmatpush.msra.mxu0 0.0
    %348 = vmatpush.msra.mxu0 0.0
    %349 = vmatpush.msra.mxu0 0.0
    %350 = vmatpush.msra.mxu0 0.0
    %351 = vmatpush.msra.mxu0 0.0
    %352 = vmatpush.msra.mxu0 %v29
    %353 = vmatpush.msra.mxu0 %v28
    %354 = vmatpush.msra.mxu0 %v27
    %355 = vmatpush.msra.mxu0 %v26
    %356 = vmatmul.f32.gmra.mxu0 %v338
    %v357 = vpop.f32.mrf.mxu0
    %v358 = vadd.f32 0.0, %v357
    %359 = vdwg.mxu0
    %v361 = vsel %vm56, %v336, 0
    %363 = vmatpush.msra.mxu0 0.0
    %364 = vmatpush.msra.mxu0 0.0
    %365 = vmatpush.msra.mxu0 0.0
    %366 = vmatpush.msra.mxu0 0.0
    %367 = vmatpush.msra.mxu0 0.0
    %368 = vmatpush.msra.mxu0 0.0
    %369 = vmatpush.msra.mxu0 0.0
    %370 = vmatpush.msra.mxu0 0.0
    %371 = vmatpush.msra.mxu0 0.0
    %372 = vmatpush.msra.mxu0 0.0
    %373 = vmatpush.msra.mxu0 0.0
    %374 = vmatpush.msra.mxu0 0.0
    %375 = vmatpush.msra.mxu0 0.0
    %376 = vmatpush.msra.mxu0 0.0
    %377 = vmatpush.msra.mxu0 %v25
    %378 = vmatpush.msra.mxu0 %v24
    %379 = vmatmul.f32.gmra.mxu0 %v361
    %v380 = vpop.f32.mrf.mxu0
    %v381 = vadd.f32 %v358, %v380
    %382 = vdwg.mxu0
    %v383 = vadd.f32 %v381, %v81
    %v384 = vtanh.pop %v383
    %s385 = scalar_lea.vmem %s0, 14
    %v386 = vld [vmem:[%s385] sm:$0x3]
    %v388 = vsel %vm32, %v384, 0
    %390 = vmatpush.msra.mxu0 0.0
    %391 = vmatpush.msra.mxu0 0.0
    %392 = vmatpush.msra.mxu0 0.0
    %393 = vmatpush.msra.mxu0 0.0
    %394 = vmatpush.msra.mxu0 0.0
    %395 = vmatpush.msra.mxu0 0.0
    %396 = vmatpush.msra.mxu0 0.0
    %397 = vmatpush.msra.mxu0 0.0
    %398 = vmatpush.msra.mxu0 0.0
    %399 = vmatpush.msra.mxu0 0.0
    %400 = vmatpush.msra.mxu0 0.0
    %401 = vmatpush.msra.mxu0 0.0
    %402 = vmatpush.msra.mxu0 %v29
    %403 = vmatpush.msra.mxu0 %v28
    %404 = vmatpush.msra.mxu0 %v27
    %405 = vmatpush.msra.mxu0 %v26
    %406 = vmatmul.f32.gmra.mxu0 %v388
    %v407 = vpop.f32.mrf.mxu0
    %v408 = vadd.f32 0.0, %v407
    %409 = vdwg.mxu0
    %v411 = vsel %vm56, %v386, 0
    %413 = vmatpush.msra.mxu0 0.0
    %414 = vmatpush.msra.mxu0 0.0
    %415 = vmatpush.msra.mxu0 0.0
    %416 = vmatpush.msra.mxu0 0.0
    %417 = vmatpush.msra.mxu0 0.0
    %418 = vmatpush.msra.mxu0 0.0
    %419 = vmatpush.msra.mxu0 0.0
    %420 = vmatpush.msra.mxu0 0.0
    %421 = vmatpush.msra.mxu0 0.0
    %422 = vmatpush.msra.mxu0 0.0
    %423 = vmatpush.msra.mxu0 0.0
    %424 = vmatpush.msra.mxu0 0.0
    %425 = vmatpush.msra.mxu0 0.0
    %426 = vmatpush.msra.mxu0 0.0
    %427 = vmatpush.msra.mxu0 %v25
    %428 = vmatpush.msra.mxu0 %v24
    %429 = vmatmul.f32.gmra.mxu0 %v411
    %v430 = vpop.f32.mrf.mxu0
    %v431 = vadd.f32 %v408, %v430
    %432 = vdwg.mxu0
    %v433 = vadd.f32 %v431, %v81
    %v434 = vtanh.pop %v433
    %v435 = vld [vmem:[%s4] sm:$0xff]
    %v436 = vld [vmem:[%s4 + $0x8] sm:$0xff]
    %v437 = vld [vmem:[%s4 + $0x10] sm:$0xff]
    %v438 = vld [vmem:[%s4 + $0x18] sm:$0xff]
    %v439 = vld [vmem:[%s5] sm:$0x1]
    %v441 = vperm.slane %v439, 0
    %v444 = vsel %vm32, %v434, 0
    %446 = vmatpush.msra.mxu0 0.0
    %447 = vmatpush.msra.mxu0 0.0
    %448 = vmatpush.msra.mxu0 0.0
    %449 = vmatpush.msra.mxu0 0.0
    %450 = vmatpush.msra.mxu0 0.0
    %451 = vmatpush.msra.mxu0 0.0
    %452 = vmatpush.msra.mxu0 0.0
    %453 = vmatpush.msra.mxu0 0.0
    %454 = vmatpush.msra.mxu0 0.0
    %455 = vmatpush.msra.mxu0 0.0
    %456 = vmatpush.msra.mxu0 0.0
    %457 = vmatpush.msra.mxu0 0.0
    %458 = vmatpush.msra.mxu0 %v438
    %459 = vmatpush.msra.mxu0 %v437
    %460 = vmatpush.msra.mxu0 %v436
    %461 = vmatpush.msra.mxu0 %v435
    %462 = vmatmul.f32.gmra.mxu0 %v444
    %v463 = vpop.f32.mrf.mxu0
    %v464 = vadd.f32 %v441, %v463
    %465 = vdwg.mxu0
    %466 = vst [vmem:[#allocation2] sm:$0x3] %v464
    // Predicated region
    $region26: #{simple_rnn_forward.1} parent=1 // pred_check
      _
    $region27: #{simple_rnn_forward.1} parent=1 // pred_check_branch
      %468 = sbr.rel (0) target = $region29
    $region28: #{simple_rnn_forward.1} parent=1 // pred_region
      %470 = vsyncadd [#allocation3], 0
      %s472 = sshll.u32 [#allocation2], 4
      %s473 = int_to_ptr.vmem [resolvable:$true] %s472
      %s474 = sshll.u32 %s6, 4
      %s475 = int_to_ptr.hbm [resolvable:$true] %s474
      %477 = dma.vmem_to_hbm [thread:$0]  %s473, 32, %s475, [#allocation3]
    $region29: #{simple_rnn_forward.1} parent=1 // pred_fallthru
      _
    // Predicated region
    $region30: #{simple_rnn_forward.1} parent=1 // pred_check
      _
    $region31: #{simple_rnn_forward.1} parent=1 // pred_check_branch
      %479 = sbr.rel (0) target = $region33
    $region32: #{simple_rnn_forward.1} parent=1 // pred_region
      %481 = dma.done [#allocation3], 32
    $region33: #{simple_rnn_forward.1} parent=1 // pred_fallthru
      _
    %482 = vsyncpa [#allocation3], 1

</llo_original>
